<compile_context>
chip_gen: v6e
topology: v6e:2x2x1
jax: 0.10.0
libtpu: 0.0.40
codegen_flags: <defaults>
</compile_context>

<pallas_src>
import functools
import math

import jax
import jax.numpy as jnp
import numpy as np
from jax.experimental import pallas as pl
from jax.experimental.pallas import tpu as pltpu


def _softplus(x):
    # numerically stable softplus, same semantics as F.softplus / jax.nn.softplus
    return jnp.logaddexp(x, 0.0)


def _decoder_kernel(x_ref, rep_ref, w0xT_ref, w1T_ref, b1_ref, w2T_ref, b2_ref,
                    out_ref, *, is_binary: bool):
    """One lane-dense row-tile of the decoder MLP (N on the lane axis).

    x_ref:    (x_dim, TN)    target_x columns for this tile
    rep_ref:  (hidden, 1)    representation @ W0[:rep_dim] + b0 for this batch
    w0xT_ref: (hidden, x_dim)
    w1T_ref:  (hidden, hidden)
    w2T_ref:  (out_dim, hidden)
    b*_ref:   column biases
    out_ref:  (out_dim, TN)  fused output: [:half] = mu, [half:] = sigma
    """
    x = x_ref[...].astype(jnp.float32)          # widen right after load (bf16 I/O ok)
    w0xT = w0xT_ref[...]
    x_dim = x.shape[0]

    # ---- layer 0: rank-x_dim VPU update; K=x_dim is too small for the MXU ----
    acc = w0xT[:, 0:1] * x[0:1, :]              # (hidden, TN)
    for k in range(1, x_dim):
        acc = acc + w0xT[:, k:k + 1] * x[k:k + 1, :]
    h = jnp.maximum(acc + rep_ref[...], 0.0)    # rep_ref already contains b0

    # ---- layer 1 (MXU): (hidden, hidden) @ (hidden, TN), lane-dense result ----
    h = jnp.dot(w1T_ref[...], h, preferred_element_type=jnp.float32) + b1_ref[...]
    h = jnp.maximum(h, 0.0)

    # ---- layer 2 (MXU, no activation): (out_dim, hidden) @ (hidden, TN) ----
    h = jnp.dot(w2T_ref[...], h, preferred_element_type=jnp.float32) + b2_ref[...]

    half = h.shape[0] // 2
    mu = h[:half, :]
    sigma = h[half:, :]

    if is_binary:
        # sigmoid_expectation(mu, sigma)
        s = 0.1 + 0.9 * _softplus(sigma)
        y = jnp.sqrt(1.0 + (3.0 / (math.pi ** 2)) * s * s)
        y = jnp.maximum(y, 1.0e-4)
        inv_y = pl.reciprocal(y, approx=True)   # EUP slot; divides stay off the VPU
        expectation = jax.nn.sigmoid(mu * inv_y)
        var = expectation * (1.0 - expectation) * (1.0 - inv_y)
        var = jnp.maximum(var, 0.0)             # guard vs approx-reciprocal overshoot
        mu = expectation
        sigma = var

    sigma = _softplus(sigma) + 1.0e-6

    # Single lane-dense store (no per-lane masking).
    out_ref[...] = jnp.concatenate([mu, sigma], axis=0).astype(out_ref.dtype)


def deterministic_decoder_forward(representation, target_x, params, is_binary,
                                  *, tn=8192, input_dtype=jnp.float32):
    """Pallas-backed forward pass of DeterministicDecoder.

    representation: (B, rep_dim) float32
    target_x:       (B, N, x_dim) float32
    params: list of (W, b) with W of shape (in, out) (already transposed
            relative to torch's nn.Linear weight), b of shape (1, out).
    input_dtype: dtype used for the target_x HBM stream (jnp.bfloat16 halves
            the dominant input bandwidth on v5e/v6e; compute stays f32).
    Returns (mu, sigma) each of shape (B, N, out_dim//2).
    # TODO(synk): torch.distributions.Independent(Normal) return value has no
    # Pallas equivalent; callers can construct it from (mu, sigma).
    """
    B, N, x_dim = target_x.shape
    rep_dim = representation.shape[-1]
    (w0, b0), (w1, b1), (w2, b2) = params
    hidden = w0.shape[1]
    out_dim = w2.shape[1]
    half = out_dim // 2

    # ---- layer-0 split (wrapper side, tiny: (B, rep_dim) @ (rep_dim, hidden)) ----
    w0_rep = jnp.asarray(w0[:rep_dim, :], jnp.float32)
    w0_xT = jnp.asarray(w0[rep_dim:, :], jnp.float32).T            # (hidden, x_dim)
    rep_proj = (jnp.dot(representation.astype(jnp.float32), w0_rep,
                        precision=jax.lax.Precision.HIGHEST)
                + b0.astype(jnp.float32)).reshape(B, hidden, 1)    # column layout

    # One-time wrapper-side transposes so the kernel never hits the XLU.
    w1T = jnp.asarray(w1, jnp.float32).T                           # (hidden, hidden)
    b1c = jnp.asarray(b1, jnp.float32).reshape(hidden, 1)
    w2T = jnp.asarray(w2, jnp.float32).T                           # (out_dim, hidden)
    b2c = jnp.asarray(b2, jnp.float32).reshape(out_dim, 1)

    # Lane-dense input layout: N on the lane axis (layout plumbing, not compute).
    x_t = jnp.swapaxes(target_x, 1, 2).astype(input_dtype)         # (B, x_dim, N)

    # ---- row tiling on the lane axis: full N if small, else multiple of 128 ----
    if N <= tn:
        TN = N
    else:
        TN = (tn // 128) * 128
        if TN == 0:
            TN = N
    n_tiles = pl.cdiv(N, TN)
    # v7x megacore: expose >= 2 parallel grid cells when B is tiny.
    if B * n_tiles < 2 and N >= 256:
        TN = ((pl.cdiv(N, 2) + 127) // 128) * 128
        n_tiles = pl.cdiv(N, TN)
    grid = (B, n_tiles)

    M = B * N
    in_itemsize = jnp.dtype(input_dtype).itemsize
    cost = pl.CostEstimate(
        flops=2 * M * (x_dim * hidden + hidden * hidden + hidden * out_dim),
        transcendentals=(6 if is_binary else 2) * M * half,
        bytes_accessed=(M * x_dim * in_itemsize + 4 * M * out_dim
                        + 4 * (B * hidden + w0_xT.size + w1T.size + b1c.size
                               + w2T.size + b2c.size)),
    )

    def _const(arr):
        nd = arr.ndim
        return pl.BlockSpec(arr.shape, lambda b, j, _nd=nd: (0,) * _nd)

    kernel = functools.partial(_decoder_kernel, is_binary=bool(is_binary))

    out3 = pl.pallas_call(
        kernel,
        out_shape=jax.ShapeDtypeStruct((B, out_dim, N), jnp.float32),
        grid=grid,
        in_specs=[
            pl.BlockSpec((None, x_dim, TN), lambda b, j: (b, 0, j)),   # target_x tile
            pl.BlockSpec((None, hidden, 1), lambda b, j: (b, 0, 0)),   # rep_proj col
            _const(w0_xT), _const(w1T), _const(b1c), _const(w2T), _const(b2c),
        ],
        out_specs=pl.BlockSpec((None, out_dim, TN), lambda b, j: (b, 0, j)),
        compiler_params=pltpu.CompilerParams(
            dimension_semantics=("parallel", "parallel"),
            vmem_limit_bytes=32 * 1024 * 1024,
        ),
        cost_estimate=cost,
    )(x_t, rep_proj, w0_xT, w1T, b1c, w2T, b2c)

    mu = jnp.swapaxes(out3[:, :half, :], 1, 2)      # (B, N, half)
    sigma = jnp.swapaxes(out3[:, half:, :], 1, 2)   # (B, N, half)
    return mu, sigma


def _reference_forward(representation, target_x, params, is_binary):
    """Pure-JAX reference mirroring the torch module (full f32 precision)."""
    B, N, _ = target_x.shape
    rep = jnp.broadcast_to(representation[:, None, :],
                           (B, N, representation.shape[-1]))
    h = jnp.concatenate([rep, target_x], axis=-1).reshape(B * N, -1)
    (w0, b0), (w1, b1), (w2, b2) = params
    hp = jax.lax.Precision.HIGHEST
    h = jnp.maximum(jnp.dot(h, w0, precision=hp) + b0, 0.0)
    h = jnp.maximum(jnp.dot(h, w1, precision=hp) + b1, 0.0)
    h = jnp.dot(h, w2, precision=hp) + b2
    h = h.reshape(B, N, -1)
    half = h.shape[-1] // 2
    mu, sigma = h[..., :half], h[..., half:]
    if is_binary:
        s = 0.1 + 0.9 * jax.nn.softplus(sigma)
        y = jnp.sqrt(1.0 + (3.0 / (math.pi ** 2)) * s * s)
        y = jnp.maximum(y, 1.0e-4)
        expectation = jax.nn.sigmoid(mu / y)
        var = expectation * (1.0 - expectation) * (1.0 - 1.0 / y)
        mu, sigma = expectation, var
    sigma = jax.nn.softplus(sigma) + 1.0e-6
    return mu, sigma


def _init_params(key, output_sizes):
    """Deterministic nn.Linear-style init (uniform(-1/sqrt(fan_in), +))."""
    params = []
    for i in range(len(output_sizes) - 1):
        fan_in, fan_out = output_sizes[i], output_sizes[i + 1]
        key, kw, kb = jax.random.split(key, 3)
        bound = 1.0 / math.sqrt(fan_in)
        w = jax.random.uniform(kw, (fan_in, fan_out), jnp.float32, -bound, bound)
        b = jax.random.uniform(kb, (1, fan_out), jnp.float32, -bound, bound)
        params.append((w, b))
    return params


def _check(rep, tx, params, is_binary, tol, **kw):
    mu, sigma = deterministic_decoder_forward(rep, tx, params, is_binary, **kw)
    jax.block_until_ready((mu, sigma))
    # Reference sees the same (possibly bf16-quantised) inputs as the kernel,
    # so the comparison isolates kernel math, not input quantisation.
    in_dt = kw.get("input_dtype", jnp.float32)
    tx_ref = tx.astype(in_dt).astype(jnp.float32)
    mu_ref, sigma_ref = _reference_forward(rep, tx_ref, params, is_binary)
    ok = bool(np.allclose(np.asarray(mu), np.asarray(mu_ref), rtol=tol, atol=tol))
    ok &= bool(np.allclose(np.asarray(sigma), np.asarray(sigma_ref),
                           rtol=tol, atol=tol))
    return ok


if __name__ == "__main__":
    key = jax.random.PRNGKey(0)

    # Small CNP-style shapes: representation dim 30, x dim 2, hidden 32,
    # final layer 4 -> mu/sigma each of dim 2.
    batch = 2
    num_points = 8
    rep_dim = 30
    x_dim = 2
    hidden = 32
    output_sizes = [rep_dim + x_dim, hidden, hidden, 4]   # 3 linear layers

    key, k_rep, k_x = jax.random.split(key, 3)
    representation = jax.random.normal(k_rep, (batch, rep_dim), jnp.float32)
    target_x = jax.random.normal(k_x, (batch, num_points, x_dim), jnp.float32)
    params = _init_params(key, output_sizes)

    TOL_F32 = 1e-4
    TOL_BIN = 5e-3   # approx reciprocal (EUP) in the is_binary branch

    ok = True
    # Case 1: tiny shapes, one row-tile per batch element.
    for is_binary in (False, True):
        ok &= _check(representation, target_x, params, is_binary,
                     TOL_BIN if is_binary else TOL_F32)

    # Case 2: multiple full row tiles per batch (pipelined grid path, TN=128).
    key, k_rep2, k_x2 = jax.random.split(key, 3)
    rep2 = jax.random.normal(k_rep2, (3, rep_dim), jnp.float32)
    tx2 = jax.random.normal(k_x2, (3, 512, x_dim), jnp.float32)
    for is_binary in (False, True):
        ok &= _check(rep2, tx2, params, is_binary,
                     TOL_BIN if is_binary else TOL_F32, tn=128)

    # Case 3: B == 1 -> N is split into >= 2 tiles (v7x megacore path).
    key, k_rep3, k_x3 = jax.random.split(key, 3)
    rep3 = jax.random.normal(k_rep3, (1, rep_dim), jnp.float32)
    tx3 = jax.random.normal(k_x3, (1, 256, x_dim), jnp.float32)
    ok &= _check(rep3, tx3, params, False, TOL_F32)

    # Case 4: bf16 input streaming + a partial last tile (N=320, TN=128).
    key, k_rep4, k_x4 = jax.random.split(key, 3)
    rep4 = jax.random.normal(k_rep4, (2, rep_dim), jnp.float32)
    tx4 = jax.random.normal(k_x4, (2, 320, x_dim), jnp.float32)
    for is_binary in (False, True):
        ok &= _check(rep4, tx4, params, is_binary,
                     TOL_BIN if is_binary else TOL_F32,
                     tn=128, input_dtype=jnp.bfloat16)

    if ok:
        print("KERNEL_OK")
    else:
        print("KERNEL_MISMATCH")
</pallas_src>

<mosaic_0001>
module attributes {stable_mosaic.version = 11 : i64} {
  func.func @_decoder_kernel(%arg0: i32, %arg1: i32, %arg2: memref<1x2x8xf32, #tpu.memory_space<vmem>>, %arg3: memref<1x32x1xf32, #tpu.memory_space<vmem>>, %arg4: memref<32x2xf32, #tpu.memory_space<vmem>>, %arg5: memref<32x32xf32, #tpu.memory_space<vmem>>, %arg6: memref<32x1xf32, #tpu.memory_space<vmem>>, %arg7: memref<4x32xf32, #tpu.memory_space<vmem>>, %arg8: memref<4x1xf32, #tpu.memory_space<vmem>>, %arg9: memref<1x4x8xf32, #tpu.memory_space<vmem>>) attributes {dimension_semantics = [#tpu.dimension_semantics<parallel>, #tpu.dimension_semantics<parallel>], iteration_bounds = array<i64: 2, 1>, scalar_prefetch = 0 : i64, scratch_operands = 0 : i64, tpu.core_type = #tpu.core_type<tc>, window_params = [{transform_indices = @transform_0, window_bounds = array<i64: 1, 2, 8>}, {transform_indices = @transform_1, window_bounds = array<i64: 1, 32, 1>}, {pipeline_mode = #tpu.pipeline_mode<synchronous>, transform_indices = @transform_2, window_bounds = array<i64: 32, 2>}, {pipeline_mode = #tpu.pipeline_mode<synchronous>, transform_indices = @transform_3, window_bounds = array<i64: 32, 32>}, {pipeline_mode = #tpu.pipeline_mode<synchronous>, transform_indices = @transform_4, window_bounds = array<i64: 32, 1>}, {pipeline_mode = #tpu.pipeline_mode<synchronous>, transform_indices = @transform_5, window_bounds = array<i64: 4, 32>}, {pipeline_mode = #tpu.pipeline_mode<synchronous>, transform_indices = @transform_6, window_bounds = array<i64: 4, 1>}, {transform_indices = @transform_7, window_bounds = array<i64: 1, 4, 8>}]} {
    %c0 = arith.constant 0 : index
    %c0_0 = arith.constant 0 : index
    %c0_1 = arith.constant 0 : index
    %0 = vector.load %arg2[%c0, %c0_0, %c0_1] : memref<1x2x8xf32, #tpu.memory_space<vmem>>, vector<1x2x8xf32>
    %1 = vector.shape_cast %0 : vector<1x2x8xf32> to vector<2x8xf32>
    %c0_2 = arith.constant 0 : index
    %c0_3 = arith.constant 0 : index
    %2 = vector.load %arg4[%c0_2, %c0_3] : memref<32x2xf32, #tpu.memory_space<vmem>>, vector<32x2xf32>
    %3 = vector.extract_strided_slice %2 {offsets = [0, 0], sizes = [32, 1], strides = [1, 1]} : vector<32x2xf32> to vector<32x1xf32>
    %4 = vector.extract_strided_slice %1 {offsets = [0, 0], sizes = [1, 8], strides = [1, 1]} : vector<2x8xf32> to vector<1x8xf32>
    %5 = vector.broadcast %3 : vector<32x1xf32> to vector<32x8xf32>
    %6 = vector.broadcast %4 : vector<1x8xf32> to vector<32x8xf32>
    %7 = arith.mulf %5, %6 : vector<32x8xf32>
    %8 = vector.extract_strided_slice %2 {offsets = [0, 1], sizes = [32, 1], strides = [1, 1]} : vector<32x2xf32> to vector<32x1xf32>
    %9 = vector.extract_strided_slice %1 {offsets = [1, 0], sizes = [1, 8], strides = [1, 1]} : vector<2x8xf32> to vector<1x8xf32>
    %10 = vector.broadcast %8 : vector<32x1xf32> to vector<32x8xf32>
    %11 = vector.broadcast %9 : vector<1x8xf32> to vector<32x8xf32>
    %12 = arith.mulf %10, %11 : vector<32x8xf32>
    %13 = arith.addf %7, %12 : vector<32x8xf32>
    %c0_4 = arith.constant 0 : index
    %c0_5 = arith.constant 0 : index
    %c0_6 = arith.constant 0 : index
    %14 = vector.load %arg3[%c0_4, %c0_5, %c0_6] : memref<1x32x1xf32, #tpu.memory_space<vmem>>, vector<1x32x1xf32>
    %15 = vector.shape_cast %14 : vector<1x32x1xf32> to vector<32x1xf32>
    %16 = vector.broadcast %15 : vector<32x1xf32> to vector<32x8xf32>
    %17 = arith.addf %13, %16 : vector<32x8xf32>
    %cst = arith.constant 0.000000e+00 : f32
    %18 = vector.broadcast %cst : f32 to vector<32x8xf32>
    %19 = arith.maximumf %17, %18 : vector<32x8xf32>
    %c0_7 = arith.constant 0 : index
    %c0_8 = arith.constant 0 : index
    %20 = vector.load %arg5[%c0_7, %c0_8] : memref<32x32xf32, #tpu.memory_space<vmem>>, vector<32x32xf32>
    %cst_9 = arith.constant dense<0.000000e+00> : vector<32x8xf32>
    %21 = tpu.matmul %20, %19, %cst_9 {dimension_numbers = #tpu.dot_dimension_numbers<[1], [0], [0], [1], [0, 0, 1, 1], [], []>} : vector<32x32xf32>, vector<32x8xf32>, vector<32x8xf32> -> vector<32x8xf32>
    %c0_10 = arith.constant 0 : index
    %c0_11 = arith.constant 0 : index
    %22 = vector.load %arg6[%c0_10, %c0_11] : memref<32x1xf32, #tpu.memory_space<vmem>>, vector<32x1xf32>
    %23 = vector.broadcast %22 : vector<32x1xf32> to vector<32x8xf32>
    %24 = arith.addf %21, %23 : vector<32x8xf32>
    %cst_12 = arith.constant 0.000000e+00 : f32
    %25 = vector.broadcast %cst_12 : f32 to vector<32x8xf32>
    %26 = arith.maximumf %24, %25 : vector<32x8xf32>
    %c0_13 = arith.constant 0 : index
    %c0_14 = arith.constant 0 : index
    %27 = vector.load %arg7[%c0_13, %c0_14] : memref<4x32xf32, #tpu.memory_space<vmem>>, vector<4x32xf32>
    %cst_15 = arith.constant dense<0.000000e+00> : vector<4x8xf32>
    %28 = tpu.matmul %27, %26, %cst_15 {dimension_numbers = #tpu.dot_dimension_numbers<[1], [0], [0], [1], [0, 0, 1, 1], [], []>} : vector<4x32xf32>, vector<32x8xf32>, vector<4x8xf32> -> vector<4x8xf32>
    %c0_16 = arith.constant 0 : index
    %c0_17 = arith.constant 0 : index
    %29 = vector.load %arg8[%c0_16, %c0_17] : memref<4x1xf32, #tpu.memory_space<vmem>>, vector<4x1xf32>
    %30 = vector.broadcast %29 : vector<4x1xf32> to vector<4x8xf32>
    %31 = arith.addf %28, %30 : vector<4x8xf32>
    %32 = vector.extract_strided_slice %31 {offsets = [0, 0], sizes = [2, 8], strides = [1, 1]} : vector<4x8xf32> to vector<2x8xf32>
    %33 = vector.extract_strided_slice %31 {offsets = [2, 0], sizes = [2, 8], strides = [1, 1]} : vector<4x8xf32> to vector<2x8xf32>
    %cst_18 = arith.constant 0.000000e+00 : f32
    %34 = vector.broadcast %cst_18 : f32 to vector<2x8xf32>
    %35 = arith.maximumf %33, %34 : vector<2x8xf32>
    %36 = vector.broadcast %cst_18 : f32 to vector<2x8xf32>
    %37 = arith.subf %33, %36 : vector<2x8xf32>
    %38 = arith.cmpf one, %37, %37 : vector<2x8xf32>
    %39 = vector.broadcast %cst_18 : f32 to vector<2x8xf32>
    %40 = arith.addf %33, %39 : vector<2x8xf32>
    %41 = math.absf %37 : vector<2x8xf32>
    %cst_19 = arith.constant 0.000000e+00 : f32
    %42 = vector.broadcast %cst_19 : f32 to vector<2x8xf32>
    %43 = arith.subf %42, %41 : vector<2x8xf32>
    %44 = math.exp %43 : vector<2x8xf32>
    %45 = math.log1p %44 : vector<2x8xf32>
    %46 = arith.addf %35, %45 : vector<2x8xf32>
    %47 = arith.select %38, %40, %46 : vector<2x8xi1>, vector<2x8xf32>
    %cst_20 = arith.constant 9.99999997E-7 : f32
    %48 = vector.broadcast %cst_20 : f32 to vector<2x8xf32>
    %49 = arith.addf %47, %48 : vector<2x8xf32>
    %50 = tpu.concatenate %32, %49 in 0 : vector<2x8xf32>, vector<2x8xf32> -> vector<4x8xf32>
    %c0_21 = arith.constant 0 : index
    %c0_22 = arith.constant 0 : index
    %c0_23 = arith.constant 0 : index
    %51 = vector.load %arg9[%c0_21, %c0_22, %c0_23] : memref<1x4x8xf32, #tpu.memory_space<vmem>>, vector<1x4x8xf32>
    %52 = vector.shape_cast %51 : vector<1x4x8xf32> to vector<4x8xf32>
    %53 = vector.shape_cast %50 : vector<4x8xf32> to vector<1x4x8xf32>
    tpu.vector_store %arg9[%c0_21, %c0_22, %c0_23], %53 {strides = array<i32>} : memref<1x4x8xf32, #tpu.memory_space<vmem>>, vector<1x4x8xf32>,
    return
  }
  func.func @transform_0(%arg0: i32, %arg1: i32) -> (i32, i32, i32) {
    %c0_i32 = arith.constant 0 : i32
    %c0_i32_0 = arith.constant 0 : i32
    return %arg0, %c0_i32, %arg1 : i32, i32, i32
  }
  func.func @transform_1(%arg0: i32, %arg1: i32) -> (i32, i32, i32) {
    %c0_i32 = arith.constant 0 : i32
    %c0_i32_0 = arith.constant 0 : i32
    %c0_i32_1 = arith.constant 0 : i32
    return %arg0, %c0_i32, %c0_i32_0 : i32, i32, i32
  }
  func.func @transform_2(%arg0: i32, %arg1: i32) -> (i32, i32) {
    %c0_i32 = arith.constant 0 : i32
    %c0_i32_0 = arith.constant 0 : i32
    %c0_i32_1 = arith.constant 0 : i32
    return %c0_i32, %c0_i32_0 : i32, i32
  }
  func.func @transform_3(%arg0: i32, %arg1: i32) -> (i32, i32) {
    %c0_i32 = arith.constant 0 : i32
    %c0_i32_0 = arith.constant 0 : i32
    %c0_i32_1 = arith.constant 0 : i32
    return %c0_i32, %c0_i32_0 : i32, i32
  }
  func.func @transform_4(%arg0: i32, %arg1: i32) -> (i32, i32) {
    %c0_i32 = arith.constant 0 : i32
    %c0_i32_0 = arith.constant 0 : i32
    %c0_i32_1 = arith.constant 0 : i32
    return %c0_i32, %c0_i32_0 : i32, i32
  }
  func.func @transform_5(%arg0: i32, %arg1: i32) -> (i32, i32) {
    %c0_i32 = arith.constant 0 : i32
    %c0_i32_0 = arith.constant 0 : i32
    %c0_i32_1 = arith.constant 0 : i32
    return %c0_i32, %c0_i32_0 : i32, i32
  }
  func.func @transform_6(%arg0: i32, %arg1: i32) -> (i32, i32) {
    %c0_i32 = arith.constant 0 : i32
    %c0_i32_0 = arith.constant 0 : i32
    %c0_i32_1 = arith.constant 0 : i32
    return %c0_i32, %c0_i32_0 : i32, i32
  }
  func.func @transform_7(%arg0: i32, %arg1: i32) -> (i32, i32, i32) {
    %c0_i32 = arith.constant 0 : i32
    %c0_i32_0 = arith.constant 0 : i32
    return %arg0, %c0_i32, %arg1 : i32, i32, i32
  }
}

</mosaic_0001>

<llo_original>
// kernel: tpu_custom_call.1
$region0: #{tpu_custom_call.1}
  #allocation0 [shape = 'u32[]', space=smem, size = 0x4, offset = 0x4, fixed_abs, tag = 'smem constant byte address 0x4 - core index']
  #allocation1 [shape = 'u32[144,128]{1,0:T(1,128)}', space=vmem, size = 0x12000, scoped, tag = 'internal scratch']
  %s0 = inlined_call_operand.vmem [shape: f32[2,2,8], index: 0, kind: input, shape index: {}]
  %s1 = inlined_call_operand.vmem [shape: f32[2,32,1], index: 1, kind: input, shape index: {}]
  %s2 = inlined_call_operand.vmem [shape: f32[32,2], index: 2, kind: input, shape index: {}]
  %s3 = inlined_call_operand.vmem [shape: f32[32,32], index: 3, kind: input, shape index: {}]
  %s4 = inlined_call_operand.vmem [shape: f32[32,1], index: 4, kind: input, shape index: {}]
  %s5 = inlined_call_operand.vmem [shape: f32[4,32], index: 5, kind: input, shape index: {}]
  %s6 = inlined_call_operand.vmem [shape: f32[4,1], index: 6, kind: input, shape index: {}]
  %s7 = inlined_call_operand.hbm [shape: f32[2,4,8], index: 7, kind: output, shape index: {}]
  %s8 = sld [smem:[#allocation0]]
  $region61: #{tpu_custom_call.1} parent=0
    _
  %s10 = ssub.s32 1, %s8
  %s11 = scalar_select 0, %s10, %s8
  $region1: #{tpu_custom_call.1} parent=0
    #allocation2 [shape = 'u8[4096]{0}', space=vmem, size = 0x1000, scoped, tag = 'output window, operand 0']
    #allocation3 [shape = 's32[2]{0}', space=sflag, size = 0x8, scoped, tag = 'scoped memory for tpu_custom_call.1']
    %12 = vsyncpa [#allocation3], 0
    %s13 = scalar_lea.sflag [#allocation3], 1
    %14 = vsyncpa %s13, 0
    loop: start=0, step=1, limit=4
    $region2: #{tpu_custom_call.1} parent=1 // loop_pre_header
      _
    $region3: #{tpu_custom_call.1} parent=1 // loop_header
      %s16 = sphi 0, %s20
      %p17 = scmp.ge.s32.totalorder %s16, 4
      %s23 = sphi 0, %s35
      %s24 = sphi 0, %s31
      %s25 = sphi 0, %s23
      %s26 = sphi 0, %s24
      %s27 = sphi 0, %s25
      %s28 = sphi 0, %s26
      %s40 = sphi 0, %s42
      %s43 = sphi 0, %s40
      %s44 = sphi 0, %s43
      %s60 = sphi 0, %s44
      %s66 = sphi 0, %s68
      %s69 = sphi 0, %s66
      %s70 = sphi 0, %s69
      %s86 = sphi 0, %s70
      %s90 = sphi 0, %s90
      %s92 = sphi 0, %s90
      %s93 = sphi 0, %s92
      %s107 = sphi 0, %s93
      %s111 = sphi 0, %s111
      %s113 = sphi 0, %s111
      %s114 = sphi 0, %s113
      %s128 = sphi 0, %s114
      %s132 = sphi 0, %s132
      %s134 = sphi 0, %s132
      %s135 = sphi 0, %s134
      %s149 = sphi 0, %s135
      %s153 = sphi 0, %s153
      %s155 = sphi 0, %s153
      %s156 = sphi 0, %s155
      %s170 = sphi 0, %s156
      %s174 = sphi 0, %s174
      %s176 = sphi 0, %s174
      %s177 = sphi 0, %s176
      %s191 = sphi 0, %s177
      %s199 = sphi 0, %s201
      %s202 = sphi 0, %s199
      %s203 = sphi 0, %s202
      %s219 = sphi 0, %s203
    $region4: #{tpu_custom_call.1} parent=1 // loop_header_branch
      %19 = sbr.rel (%p17) target = $region8
    $region5: #{tpu_custom_call.1} parent=1 // loop_body
      %s21 = ssub.s32 %s16, 1
      %s22 = ssub.s32 %s16, 2
      %s29 = sadd.s32 1, %s24
      %p30 = scmp.ge.s32.totalorder %s29, 1
      %s31 = scalar_select %p30, 0, %s29
      %s32 = sadd.s32 1, %s23
      %s33 = scalar_select %p30, %s32, %s23
      %p34 = scmp.ge.s32.totalorder %s33, 2
      %s35 = scalar_select %p34, 0, %s33
      %s36 = ssub.s32 %s23, %s35
      %s37 = ssub.s32 %s24, %s31
      %s38 = sor.u32 %s36, %s37
      %p39 = scmp.eq.s32.totalorder %s38, 0
      %s41 = sadd.s32 %s40, 1
      %s42 = scalar_select %p39, %s40, %s41
      %p45 = pneg %p39
      %p46 = scmp.eq.s32.totalorder %s16, 1
      %p47 = por %p45, %p46
      %p48 = scmp.ne.s32.totalorder %s40, %s43
      %p49 = scmp.eq.s32.totalorder %s16, 0
      %p50 = por %p48, %p49
      %p51 = scmp.ne.s32.totalorder %s40, %s43
      %p52 = scmp.eq.s32.totalorder %s21, 1
      %p53 = por %p51, %p52
      %p54 = scmp.ne.s32.totalorder %s43, %s44
      %p55 = scmp.eq.s32.totalorder %s21, 0
      %p56 = por %p54, %p55
      %p57 = scmp.ne.s32.totalorder %s43, %s44
      %p58 = scmp.eq.s32.totalorder %s22, 1
      %p59 = por %p57, %p58
      %p61 = scmp.ne.s32.totalorder %s44, %s60
      %p62 = scmp.eq.s32.totalorder %s22, 0
      %p63 = por %p61, %p62
      %s64 = ssub.s32 %s23, %s35
      %p65 = scmp.eq.s32.totalorder %s64, 0
      %s67 = sadd.s32 %s66, 1
      %s68 = scalar_select %p65, %s66, %s67
      %p71 = pneg %p65
      %p72 = scmp.eq.s32.totalorder %s16, 1
      %p73 = por %p71, %p72
      %p74 = scmp.ne.s32.totalorder %s66, %s69
      %p75 = scmp.eq.s32.totalorder %s16, 0
      %p76 = por %p74, %p75
      %p77 = scmp.ne.s32.totalorder %s66, %s69
      %p78 = scmp.eq.s32.totalorder %s21, 1
      %p79 = por %p77, %p78
      %p80 = scmp.ne.s32.totalorder %s69, %s70
      %p81 = scmp.eq.s32.totalorder %s21, 0
      %p82 = por %p80, %p81
      %p83 = scmp.ne.s32.totalorder %s69, %s70
      %p84 = scmp.eq.s32.totalorder %s22, 1
      %p85 = por %p83, %p84
      %p87 = scmp.ne.s32.totalorder %s70, %s86
      %p88 = scmp.eq.s32.totalorder %s22, 0
      %p89 = por %p87, %p88
      %s91 = sadd.s32 %s90, 1
      %p94 = scmp.eq.s32.totalorder %s16, 1
      %p95 = scmp.ne.s32.totalorder %s90, %s92
      %p96 = scmp.eq.s32.totalorder %s16, 0
      %p97 = por %p95, %p96
      %p98 = scmp.ne.s32.totalorder %s90, %s92
      %p99 = scmp.eq.s32.totalorder %s21, 1
      %p100 = por %p98, %p99
      %p101 = scmp.ne.s32.totalorder %s92, %s93
      %p102 = scmp.eq.s32.totalorder %s21, 0
      %p103 = por %p101, %p102
      %p104 = scmp.ne.s32.totalorder %s92, %s93
      %p105 = scmp.eq.s32.totalorder %s22, 1
      %p106 = por %p104, %p105
      %p108 = scmp.ne.s32.totalorder %s93, %s107
      %p109 = scmp.eq.s32.totalorder %s22, 0
      %p110 = por %p108, %p109
      %s112 = sadd.s32 %s111, 1
      %p115 = scmp.eq.s32.totalorder %s16, 1
      %p116 = scmp.ne.s32.totalorder %s111, %s113
      %p117 = scmp.eq.s32.totalorder %s16, 0
      %p118 = por %p116, %p117
      %p119 = scmp.ne.s32.totalorder %s111, %s113
      %p120 = scmp.eq.s32.totalorder %s21, 1
      %p121 = por %p119, %p120
      %p122 = scmp.ne.s32.totalorder %s113, %s114
      %p123 = scmp.eq.s32.totalorder %s21, 0
      %p124 = por %p122, %p123
      %p125 = scmp.ne.s32.totalorder %s113, %s114
      %p126 = scmp.eq.s32.totalorder %s22, 1
      %p127 = por %p125, %p126
      %p129 = scmp.ne.s32.totalorder %s114, %s128
      %p130 = scmp.eq.s32.totalorder %s22, 0
      %p131 = por %p129, %p130
      %s133 = sadd.s32 %s132, 1
      %p136 = scmp.eq.s32.totalorder %s16, 1
      %p137 = scmp.ne.s32.totalorder %s132, %s134
      %p138 = scmp.eq.s32.totalorder %s16, 0
      %p139 = por %p137, %p138
      %p140 = scmp.ne.s32.totalorder %s132, %s134
      %p141 = scmp.eq.s32.totalorder %s21, 1
      %p142 = por %p140, %p141
      %p143 = scmp.ne.s32.totalorder %s134, %s135
      %p144 = scmp.eq.s32.totalorder %s21, 0
      %p145 = por %p143, %p144
      %p146 = scmp.ne.s32.totalorder %s134, %s135
      %p147 = scmp.eq.s32.totalorder %s22, 1
      %p148 = por %p146, %p147
      %p150 = scmp.ne.s32.totalorder %s135, %s149
      %p151 = scmp.eq.s32.totalorder %s22, 0
      %p152 = por %p150, %p151
      %s154 = sadd.s32 %s153, 1
      %p157 = scmp.eq.s32.totalorder %s16, 1
      %p158 = scmp.ne.s32.totalorder %s153, %s155
      %p159 = scmp.eq.s32.totalorder %s16, 0
      %p160 = por %p158, %p159
      %p161 = scmp.ne.s32.totalorder %s153, %s155
      %p162 = scmp.eq.s32.totalorder %s21, 1
      %p163 = por %p161, %p162
      %p164 = scmp.ne.s32.totalorder %s155, %s156
      %p165 = scmp.eq.s32.totalorder %s21, 0
      %p166 = por %p164, %p165
      %p167 = scmp.ne.s32.totalorder %s155, %s156
      %p168 = scmp.eq.s32.totalorder %s22, 1
      %p169 = por %p167, %p168
      %p171 = scmp.ne.s32.totalorder %s156, %s170
      %p172 = scmp.eq.s32.totalorder %s22, 0
      %p173 = por %p171, %p172
      %s175 = sadd.s32 %s174, 1
      %p178 = scmp.eq.s32.totalorder %s16, 1
      %p179 = scmp.ne.s32.totalorder %s174, %s176
      %p180 = scmp.eq.s32.totalorder %s16, 0
      %p181 = por %p179, %p180
      %p182 = scmp.ne.s32.totalorder %s174, %s176
      %p183 = scmp.eq.s32.totalorder %s21, 1
      %p184 = por %p182, %p183
      %p185 = scmp.ne.s32.totalorder %s176, %s177
      %p186 = scmp.eq.s32.totalorder %s21, 0
      %p187 = por %p185, %p186
      %p188 = scmp.ne.s32.totalorder %s176, %s177
      %p189 = scmp.eq.s32.totalorder %s22, 1
      %p190 = por %p188, %p189
      %p192 = scmp.ne.s32.totalorder %s177, %s191
      %p193 = scmp.eq.s32.totalorder %s22, 0
      %p194 = por %p192, %p193
      %s195 = ssub.s32 %s23, %s35
      %s196 = ssub.s32 %s24, %s31
      %s197 = sor.u32 %s195, %s196
      %p198 = scmp.eq.s32.totalorder %s197, 0
      %s200 = sadd.s32 %s199, 1
      %s201 = scalar_select %p198, %s199, %s200
      %p204 = pneg %p198
      %p205 = scmp.eq.s32.totalorder %s16, 1
      %p206 = por %p204, %p205
      %p207 = scmp.ne.s32.totalorder %s199, %s202
      %p208 = scmp.eq.s32.totalorder %s16, 0
      %p209 = por %p207, %p208
      %p210 = scmp.ne.s32.totalorder %s199, %s202
      %p211 = scmp.eq.s32.totalorder %s21, 1
      %p212 = por %p210, %p211
      %p213 = scmp.ne.s32.totalorder %s202, %s203
      %p214 = scmp.eq.s32.totalorder %s21, 0
      %p215 = por %p213, %p214
      %p216 = scmp.ne.s32.totalorder %s202, %s203
      %p217 = scmp.eq.s32.totalorder %s22, 1
      %p218 = por %p216, %p217
      %p220 = scmp.ne.s32.totalorder %s203, %s219
      %p221 = scmp.eq.s32.totalorder %s22, 0
      %p222 = por %p220, %p221
      %p223 = scmp.le.s32.totalorder 1, %s16
      %p224 = scmp.lt.s32.totalorder %s16, 3
      %p225 = pnand %p223, %p224
      %p226 = pneg %p225
      // Predicated region
      $region9: #{tpu_custom_call.1} parent=5 // pred_check
        _
      $region10: #{tpu_custom_call.1} parent=5 // pred_check_branch
        %228 = sbr.rel (%p225) target = $region12
      $region11: #{tpu_custom_call.1} parent=5 // pred_region
        %s229 = ssub.s32 %s16, 1
        // Predicated region
        $region13: #{tpu_custom_call.1} parent=11 // pred_check
          %p230 = pneg %p103
        $region14: #{tpu_custom_call.1} parent=11 // pred_check_branch
          %232 = sbr.rel (%p230) target = $region16
        $region15: #{tpu_custom_call.1} parent=11 // pred_region
          _
        $region16: #{tpu_custom_call.1} parent=11 // pred_fallthru
          _
        // Predicated region
        $region17: #{tpu_custom_call.1} parent=11 // pred_check
          %p233 = pneg %p124
        $region18: #{tpu_custom_call.1} parent=11 // pred_check_branch
          %235 = sbr.rel (%p233) target = $region20
        $region19: #{tpu_custom_call.1} parent=11 // pred_region
          _
        $region20: #{tpu_custom_call.1} parent=11 // pred_fallthru
          _
        // Predicated region
        $region21: #{tpu_custom_call.1} parent=11 // pred_check
          %p236 = pneg %p145
        $region22: #{tpu_custom_call.1} parent=11 // pred_check_branch
          %238 = sbr.rel (%p236) target = $region24
        $region23: #{tpu_custom_call.1} parent=11 // pred_region
          _
        $region24: #{tpu_custom_call.1} parent=11 // pred_fallthru
          _
        // Predicated region
        $region25: #{tpu_custom_call.1} parent=11 // pred_check
          %p239 = pneg %p166
        $region26: #{tpu_custom_call.1} parent=11 // pred_check_branch
          %241 = sbr.rel (%p239) target = $region28
        $region27: #{tpu_custom_call.1} parent=11 // pred_region
          _
        $region28: #{tpu_custom_call.1} parent=11 // pred_fallthru
          _
        // Predicated region
        $region29: #{tpu_custom_call.1} parent=11 // pred_check
          %p242 = pneg %p187
        $region30: #{tpu_custom_call.1} parent=11 // pred_check_branch
          %244 = sbr.rel (%p242) target = $region32
        $region31: #{tpu_custom_call.1} parent=11 // pred_region
          _
        $region32: #{tpu_custom_call.1} parent=11 // pred_fallthru
          _
      $region12: #{tpu_custom_call.1} parent=5 // pred_fallthru
        _
      %p245 = scmp.lt.s32.totalorder %s16, 2
      // Predicated region
      $region33: #{tpu_custom_call.1} parent=5 // pred_check
        %p246 = pneg %p245
      $region34: #{tpu_custom_call.1} parent=5 // pred_check_branch
        %248 = sbr.rel (%p246) target = $region36
      $region35: #{tpu_custom_call.1} parent=5 // pred_region
        // Predicated region
        $region37: #{tpu_custom_call.1} parent=35 // pred_check
          %p249 = pneg %p50
        $region38: #{tpu_custom_call.1} parent=35 // pred_check_branch
          %251 = sbr.rel (%p249) target = $region40
        $region39: #{tpu_custom_call.1} parent=35 // pred_region
          %p252 = scmp.lt.s32.totalorder %s23, 1
          %s253 = scalar_select %p252, %s23, 1
          %p254 = scmp.lt.s32.totalorder %s24, 0
          %s255 = scalar_select %p254, %s24, 0
          %s256 = sadd.s32 %s255, %s253
          %s257 = smul.addr %s256, 2
          %s258 = scalar_lea.vmem %s0, %s257
        $region40: #{tpu_custom_call.1} parent=35 // pred_fallthru
          _
        // Predicated region
        $region41: #{tpu_custom_call.1} parent=35 // pred_check
          %p259 = pneg %p76
        $region42: #{tpu_custom_call.1} parent=35 // pred_check_branch
          %261 = sbr.rel (%p259) target = $region44
        $region43: #{tpu_custom_call.1} parent=35 // pred_region
          %p262 = scmp.lt.s32.totalorder %s23, 1
          %s263 = scalar_select %p262, %s23, 1
          %s264 = smul.addr %s263, 4
          %s265 = smul.addr %s264, 8
          %s266 = scalar_lea.vmem %s1, %s265
        $region44: #{tpu_custom_call.1} parent=35 // pred_fallthru
          _
      $region36: #{tpu_custom_call.1} parent=5 // pred_fallthru
        _
      %p267 = scmp.le.s32.totalorder 1, %s16
      %p268 = scmp.lt.s32.totalorder %s16, 3
      %p269 = pnand %p267, %p268
      %p270 = pneg %p269
      // Predicated region
      $region45: #{tpu_custom_call.1} parent=5 // pred_check
        _
      $region46: #{tpu_custom_call.1} parent=5 // pred_check_branch
        %272 = sbr.rel (%p269) target = $region48
      $region47: #{tpu_custom_call.1} parent=5 // pred_region
        %s273 = ssub.s32 %s16, 1
        %p274 = scmp.lt.s32.totalorder %s25, 1
        %s275 = scalar_select %p274, %s25, 1
        %p276 = scmp.lt.s32.totalorder %s26, 0
        %s277 = scalar_select %p276, %s26, 0
        %s278 = sadd.s32 %s277, %s275
        %s279 = smul.addr %s278, 2
        %s280 = scalar_lea.vmem %s0, %s279
        %p281 = pneg %p56
        %p282 = pneg %p53
        %p283 = scmp.lt.s32.totalorder %s25, 1
        %s284 = scalar_select %p283, %s25, 1
        %s285 = smul.addr %s284, 4
        %s286 = smul.addr %s285, 8
        %s287 = scalar_lea.vmem %s1, %s286
        %p288 = pneg %p82
        %p289 = pneg %p79
        %p290 = pneg %p103
        %p291 = pneg %p100
        %p292 = pneg %p124
        %p293 = pneg %p121
        %p294 = pneg %p145
        %p295 = pneg %p142
        %p296 = pneg %p166
        %p297 = pneg %p163
        %p298 = pneg %p187
        %p299 = pneg %p184
        %p300 = pneg %p215
        %p301 = pneg %p212
        %s302 = sand.u32 %s202, 1
        %s303 = scalar_lea.sflag [#allocation3], %s302
        %s304 = sand.u32 %s202, 1
        %s305 = smul.addr %s304, 4
        %s306 = scalar_lea.vmem [#allocation2], %s305
        %p307 = scmp.lt.s32.totalorder %s25, 1
        %s308 = scalar_select %p307, %s25, 1
        %p309 = scmp.lt.s32.totalorder %s26, 0
        %s310 = scalar_select %p309, %s26, 0
        %s311 = sadd.s32 %s310, %s308
        %s312 = smul.addr %s311, 2
        %s313 = scalar_lea.vmem %s0, %s312
        %p314 = scmp.lt.s32.totalorder %s25, 1
        %s315 = scalar_select %p314, %s25, 1
        %s316 = smul.addr %s315, 4
        %s317 = smul.addr %s316, 8
        %s318 = scalar_lea.vmem %s1, %s317
        %v319 = vld [vmem:[%s313] sm:$0x3]
        %v320 = vld [vmem:[%s2] sm:$0xff]
        %v321 = vld [vmem:[%s2 + $0x8] sm:$0xff]
        %v322 = vld [vmem:[%s2 + $0x10] sm:$0xff]
        %v323 = vld [vmem:[%s2 + $0x18] sm:$0xff]
        %325 = vset.pattern.permute.xlu0 0
        %326 = vperm.xlu0 %325, %v320
        %v327 = vpop.permute.xlu0 %326
        %330 = vset.pattern.permute.xlu0 0
        %331 = vperm.xlu0 %330, %v321
        %v332 = vpop.permute.xlu0 %331
        %335 = vset.pattern.permute.xlu0 0
        %336 = vperm.xlu0 %335, %v322
        %v337 = vpop.permute.xlu0 %336
        %340 = vset.pattern.permute.xlu0 0
        %341 = vperm.xlu0 %340, %v323
        %v342 = vpop.permute.xlu0 %341
        %v344 = vlaneseq
        %v345 = vshrl.u32 %v344, 7
        %v346 = vsub.s32 0, %v345
        %v347 = vrot.slane %v319, %v346
        %v348 = vmul.f32 %v327, %v347
        %v349 = vmul.f32 %v332, %v347
        %v350 = vmul.f32 %v337, %v347
        %v351 = vmul.f32 %v342, %v347
        %352 = vset.pattern.permute.xlu0 1
        %353 = vperm.xlu0 %352, %v320
        %v354 = vpop.permute.xlu0 %353
        %356 = vset.pattern.permute.xlu0 1
        %357 = vperm.xlu0 %356, %v321
        %v358 = vpop.permute.xlu0 %357
        %360 = vset.pattern.permute.xlu0 1
        %361 = vperm.xlu0 %360, %v322
        %v362 = vpop.permute.xlu0 %361
        %364 = vset.pattern.permute.xlu0 1
        %365 = vperm.xlu0 %364, %v323
        %v366 = vpop.permute.xlu0 %365
        %v368 = vlaneseq
        %v369 = vshrl.u32 %v368, 7
        %v370 = vsub.s32 1, %v369
        %v371 = vrot.slane %v319, %v370
        %v372 = vmul.f32 %v354, %v371
        %v373 = vmul.f32 %v358, %v371
        %v374 = vmul.f32 %v362, %v371
        %v375 = vmul.f32 %v366, %v371
        %v376 = vadd.f32 %v348, %v372
        %v377 = vadd.f32 %v349, %v373
        %v378 = vadd.f32 %v350, %v374
        %v379 = vadd.f32 %v351, %v375
        %v380 = vld [vmem:[%s318] sm:$0xff]
        %v381 = vld [vmem:[%s318 + $0x8] sm:$0xff]
        %v382 = vld [vmem:[%s318 + $0x10] sm:$0xff]
        %v383 = vld [vmem:[%s318 + $0x18] sm:$0xff]
        %385 = vset.pattern.permute.xlu0 0
        %386 = vperm.xlu0 %385, %v380
        %v387 = vpop.permute.xlu0 %386
        %390 = vset.pattern.permute.xlu0 0
        %391 = vperm.xlu0 %390, %v381
        %v392 = vpop.permute.xlu0 %391
        %395 = vset.pattern.permute.xlu0 0
        %396 = vperm.xlu0 %395, %v382
        %v397 = vpop.permute.xlu0 %396
        %400 = vset.pattern.permute.xlu0 0
        %401 = vperm.xlu0 %400, %v383
        %v402 = vpop.permute.xlu0 %401
        %v404 = vadd.f32 %v376, %v387
        %v405 = vadd.f32 %v377, %v392
        %v406 = vadd.f32 %v378, %v397
        %v407 = vadd.f32 %v379, %v402
        %v408 = vmax.f32 %v404, 0.0
        %v409 = vmax.f32 %v405, 0.0
        %v410 = vmax.f32 %v406, 0.0
        %v411 = vmax.f32 %v407, 0.0
        %v412 = vld [vmem:[%s3] sm:$0xff]
        %v413 = vld [vmem:[%s3 + $0x8] sm:$0xff]
        %v414 = vld [vmem:[%s3 + $0x10] sm:$0xff]
        %v415 = vld [vmem:[%s3 + $0x18] sm:$0xff]
        %v416 = vld [vmem:[%s4] sm:$0xff]
        %v417 = vld [vmem:[%s4 + $0x8] sm:$0xff]
        %v418 = vld [vmem:[%s4 + $0x10] sm:$0xff]
        %v419 = vld [vmem:[%s4 + $0x18] sm:$0xff]
        %421 = vset.pattern.permute.xlu0 0
        %422 = vperm.xlu0 %421, %v416
        %v423 = vpop.permute.xlu0 %422
        %426 = vset.pattern.permute.xlu0 0
        %427 = vperm.xlu0 %426, %v417
        %v428 = vpop.permute.xlu0 %427
        %431 = vset.pattern.permute.xlu0 0
        %432 = vperm.xlu0 %431, %v418
        %v433 = vpop.permute.xlu0 %432
        %436 = vset.pattern.permute.xlu0 0
        %437 = vperm.xlu0 %436, %v419
        %v438 = vpop.permute.xlu0 %437
        %vm440 = vcmask 261120
        %v442 = vsel %vm440, %v412, 0
        %v445 = vsel %vm440, %v413, 0
        %v448 = vsel %vm440, %v414, 0
        %v451 = vsel %vm440, %v415, 0
        %453 = vmatprep.subr.mxu0 0.0
        %454 = vmatpush1.msra.mxu0 0.0
        %455 = vmatprep.subr.mxu0 0.0
        %456 = vmatpush1.msra.mxu0 0.0
        %457 = vmatprep.subr.mxu0 0.0
        %458 = vmatpush1.msra.mxu0 0.0
        %459 = vmatprep.subr.mxu0 0.0
        %460 = vmatpush1.msra.mxu0 0.0
        %461 = vmatprep.subr.mxu0 0.0
        %462 = vmatpush1.msra.mxu0 0.0
        %463 = vmatprep.subr.mxu0 0.0
        %464 = vmatpush1.msra.mxu0 0.0
        %465 = vmatprep.subr.mxu0 0.0
        %466 = vmatpush1.msra.mxu0 0.0
        %467 = vmatprep.subr.mxu0 0.0
        %468 = vmatpush1.msra.mxu0 0.0
        %469 = vmatprep.subr.mxu0 0.0
        %470 = vmatpush1.msra.mxu0 0.0
        %471 = vmatprep.subr.mxu0 0.0
        %472 = vmatpush1.msra.mxu0 0.0
        %473 = vmatprep.subr.mxu0 0.0
        %474 = vmatpush1.msra.mxu0 0.0
        %475 = vmatprep.subr.mxu0 0.0
        %476 = vmatpush1.msra.mxu0 0.0
        %477 = vmatprep.subr.mxu0 0.0
        %478 = vmatpush1.msra.mxu0 %v411
        %479 = vmatprep.subr.mxu0 0.0
        %480 = vmatpush1.msra.mxu0 %v410
        %481 = vmatprep.subr.mxu0 0.0
        %482 = vmatpush1.msra.mxu0 %v409
        %483 = vmatprep.subr.mxu0 0.0
        %484 = vmatpush1.msra.mxu0 %v408
        %485 = vmatprep.subr.mxu0 0.0
        %486 = vmatpush2.msra.mxu0 0.0
        %487 = vmatprep.subr.mxu0 0.0
        %488 = vmatpush2.msra.mxu0 0.0
        %489 = vmatprep.subr.mxu0 0.0
        %490 = vmatpush2.msra.mxu0 0.0
        %491 = vmatprep.subr.mxu0 0.0
        %492 = vmatpush2.msra.mxu0 0.0
        %493 = vmatprep.subr.mxu0 0.0
        %494 = vmatpush2.msra.mxu0 0.0
        %495 = vmatprep.subr.mxu0 0.0
        %496 = vmatpush2.msra.mxu0 0.0
        %497 = vmatprep.subr.mxu0 0.0
        %498 = vmatpush2.msra.mxu0 0.0
        %499 = vmatprep.subr.mxu0 0.0
        %500 = vmatpush2.msra.mxu0 0.0
        %501 = vmatprep.subr.mxu0 0.0
        %502 = vmatpush2.msra.mxu0 0.0
        %503 = vmatprep.subr.mxu0 0.0
        %504 = vmatpush2.msra.mxu0 0.0
        %505 = vmatprep.subr.mxu0 0.0
        %506 = vmatpush2.msra.mxu0 0.0
        %507 = vmatprep.subr.mxu0 0.0
        %508 = vmatpush2.msra.mxu0 0.0
        %509 = vmatprep.subr.mxu0 0.0
        %510 = vmatpush2.msra.mxu0 0.0
        %511 = vmatprep.subr.mxu0 0.0
        %512 = vmatpush2.msra.mxu0 0.0
        %513 = vmatprep.subr.mxu0 0.0
        %514 = vmatpush2.msra.mxu0 0.0
        %515 = vmatprep.subr.mxu0 0.0
        %516 = vmatpush2.msra.mxu0 0.0
        %517 = vmatprep.mubr.f32.mxu0 0.0
        %518 = vmatmul.mubr.f32.gmra.mxu0 %v442
        %v519 = vpop.f32.mrf.mxu0
        %v520 = vadd.f32 %v423, %v519
        %v521 = vpop.f32.mrf.mxu0
        %522 = vmatprep.mubr.f32.mxu0 0.0
        %523 = vmatmul.mubr.f32.gmra.mxu0 %v445
        %v524 = vpop.f32.mrf.mxu0
        %v525 = vadd.f32 %v428, %v524
        %v526 = vpop.f32.mrf.mxu0
        %527 = vmatprep.mubr.f32.mxu0 0.0
        %528 = vmatmul.mubr.f32.gmra.mxu0 %v448
        %v529 = vpop.f32.mrf.mxu0
        %v530 = vadd.f32 %v433, %v529
        %v531 = vpop.f32.mrf.mxu0
        %532 = vmatprep.mubr.f32.mxu0 0.0
        %533 = vmatmul.mubr.f32.gmra.mxu0 %v451
        %v534 = vpop.f32.mrf.mxu0
        %v535 = vadd.f32 %v438, %v534
        %v536 = vpop.f32.mrf.mxu0
        %537 = vdwg.mxu0
        %v538 = vmax.f32 %v520, 0.0
        %v539 = vmax.f32 %v525, 0.0
        %v540 = vmax.f32 %v530, 0.0
        %v541 = vmax.f32 %v535, 0.0
        %v542 = vld [vmem:[%s5] sm:$0xf]
        %v543 = vld [vmem:[%s6] sm:$0xf]
        %545 = vset.pattern.permute.xlu0 0
        %546 = vperm.xlu0 %545, %v543
        %v547 = vpop.permute.xlu0 %546
        %v550 = vsel %vm440, %v542, 0
        %552 = vmatprep.subr.mxu0 0.0
        %553 = vmatpush1.msra.mxu0 0.0
        %554 = vmatprep.subr.mxu0 0.0
        %555 = vmatpush1.msra.mxu0 0.0
        %556 = vmatprep.subr.mxu0 0.0
        %557 = vmatpush1.msra.mxu0 0.0
        %558 = vmatprep.subr.mxu0 0.0
        %559 = vmatpush1.msra.mxu0 0.0
        %560 = vmatprep.subr.mxu0 0.0
        %561 = vmatpush1.msra.mxu0 0.0
        %562 = vmatprep.subr.mxu0 0.0
        %563 = vmatpush1.msra.mxu0 0.0
        %564 = vmatprep.subr.mxu0 0.0
        %565 = vmatpush1.msra.mxu0 0.0
        %566 = vmatprep.subr.mxu0 0.0
        %567 = vmatpush1.msra.mxu0 0.0
        %568 = vmatprep.subr.mxu0 0.0
        %569 = vmatpush1.msra.mxu0 0.0
        %570 = vmatprep.subr.mxu0 0.0
        %571 = vmatpush1.msra.mxu0 0.0
        %572 = vmatprep.subr.mxu0 0.0
        %573 = vmatpush1.msra.mxu0 0.0
        %574 = vmatprep.subr.mxu0 0.0
        %575 = vmatpush1.msra.mxu0 0.0
        %576 = vmatprep.subr.mxu0 0.0
        %577 = vmatpush1.msra.mxu0 %v541
        %578 = vmatprep.subr.mxu0 0.0
        %579 = vmatpush1.msra.mxu0 %v540
        %580 = vmatprep.subr.mxu0 0.0
        %581 = vmatpush1.msra.mxu0 %v539
        %582 = vmatprep.subr.mxu0 0.0
        %583 = vmatpush1.msra.mxu0 %v538
        %584 = vmatprep.subr.mxu0 0.0
        %585 = vmatpush2.msra.mxu0 0.0
        %586 = vmatprep.subr.mxu0 0.0
        %587 = vmatpush2.msra.mxu0 0.0
        %588 = vmatprep.subr.mxu0 0.0
        %589 = vmatpush2.msra.mxu0 0.0
        %590 = vmatprep.subr.mxu0 0.0
        %591 = vmatpush2.msra.mxu0 0.0
        %592 = vmatprep.subr.mxu0 0.0
        %593 = vmatpush2.msra.mxu0 0.0
        %594 = vmatprep.subr.mxu0 0.0
        %595 = vmatpush2.msra.mxu0 0.0
        %596 = vmatprep.subr.mxu0 0.0
        %597 = vmatpush2.msra.mxu0 0.0
        %598 = vmatprep.subr.mxu0 0.0
        %599 = vmatpush2.msra.mxu0 0.0
        %600 = vmatprep.subr.mxu0 0.0
        %601 = vmatpush2.msra.mxu0 0.0
        %602 = vmatprep.subr.mxu0 0.0
        %603 = vmatpush2.msra.mxu0 0.0
        %604 = vmatprep.subr.mxu0 0.0
        %605 = vmatpush2.msra.mxu0 0.0
        %606 = vmatprep.subr.mxu0 0.0
        %607 = vmatpush2.msra.mxu0 0.0
        %608 = vmatprep.subr.mxu0 0.0
        %609 = vmatpush2.msra.mxu0 0.0
        %610 = vmatprep.subr.mxu0 0.0
        %611 = vmatpush2.msra.mxu0 0.0
        %612 = vmatprep.subr.mxu0 0.0
        %613 = vmatpush2.msra.mxu0 0.0
        %614 = vmatprep.subr.mxu0 0.0
        %615 = vmatpush2.msra.mxu0 0.0
        %616 = vmatprep.mubr.f32.mxu0 0.0
        %617 = vmatmul.mubr.f32.gmra.mxu0 %v550
        %v618 = vpop.f32.mrf.mxu0
        %v619 = vadd.f32 %v547, %v618
        %v620 = vpop.f32.mrf.mxu0
        %621 = vdwg.mxu0
        %v622 = vmax.f32 %v619, 0.0
        %vm623 = vcmp.ne.f32.partialorder %v619, %v619
        %v624 = vadd.f32 %v619, 0.0
        %v625 = vand.u32 2147483647, %v619
        %v626 = vsub.f32 0.0, %v625
        %v627 = vmul.f32 %v626, 1.442695
        %v628 = vpow.pop %v627
        %v629 = vadd.f32 %v628, 1.0
        %v630 = vlog2.pop %v629
        %v631 = vmul.f32 %v630, 0.6931472
        %v632 = vmul.f32 -0.5, %v628
        %v633 = vadd.f32 %v632, 1.0
        %v634 = vmul.f32 %v633, %v628
        %v635 = vand.u32 2147483647, %v628
        %vm636 = vcmp.lt.f32.partialorder %v635, 0.0004427343
        %v637 = vsel %vm636, %v634, %v631
        %v638 = vadd.f32 %v622, %v637
        %v639 = vsel %vm623, %v624, %v638
        %v640 = vadd.f32 %v639, 1e-06
        %vm641 = vcmask 1041408
        %v642 = vsel %vm641, %v619, %v640
        %vm643 = vcmask 60416
        %644 = vst.msk [vmem:[%s306] sm:$0xf] %vm643, %v642
        %s645 = sand.u32 %s202, 1
        %s646 = scalar_lea.sflag [#allocation3], %s645
        %s647 = sand.u32 %s202, 1
        %s648 = smul.addr %s647, 4
        %s649 = scalar_lea.vmem [#allocation2], %s648
        // Predicated region
        $region49: #{tpu_custom_call.1} parent=47 // pred_check
          %p650 = pneg %p212
        $region50: #{tpu_custom_call.1} parent=47 // pred_check_branch
          %652 = sbr.rel (%p650) target = $region52
        $region51: #{tpu_custom_call.1} parent=47 // pred_region
          %s654 = ssub.s32 64, 64
          %655 = vsyncadd %s646, %s654
          %s656 = sadd.s32 %s26, %s25
          %s657 = smul.addr %s656, 64
          %s658 = scalar_lea.hbm %s7, %s657
          %s660 = sshll.u32 %s649, 4
          %s661 = int_to_ptr.vmem [resolvable:$true] %s660
          %663 = dma.vmem_to_hbm [thread:$0]  %s661, 64, %s658, %s646
        $region52: #{tpu_custom_call.1} parent=47 // pred_fallthru
          _
      $region48: #{tpu_custom_call.1} parent=5 // pred_fallthru
        _
      %p664 = scmp.le.s32.totalorder 2, %s16
      // Predicated region
      $region53: #{tpu_custom_call.1} parent=5 // pred_check
        %p665 = pneg %p664
      $region54: #{tpu_custom_call.1} parent=5 // pred_check_branch
        %667 = sbr.rel (%p665) target = $region56
      $region55: #{tpu_custom_call.1} parent=5 // pred_region
        %s668 = ssub.s32 %s16, 2
        // Predicated region
        $region57: #{tpu_custom_call.1} parent=55 // pred_check
          %p669 = pneg %p218
        $region58: #{tpu_custom_call.1} parent=55 // pred_check_branch
          %671 = sbr.rel (%p669) target = $region60
        $region59: #{tpu_custom_call.1} parent=55 // pred_region
          %s672 = sand.u32 %s203, 1
          %s673 = scalar_lea.sflag [#allocation3], %s672
          %s674 = sand.u32 %s203, 1
          %s675 = smul.addr %s674, 4
          %s676 = scalar_lea.vmem [#allocation2], %s675
          %677 = dma.done %s673, 64
        $region60: #{tpu_custom_call.1} parent=55 // pred_fallthru
          _
      $region56: #{tpu_custom_call.1} parent=5 // pred_fallthru
        _
    $region6: #{tpu_custom_call.1} parent=1 // loop_footer
      %s20 = sadd.s32 1, %s16
    $region7: #{tpu_custom_call.1} parent=1 // loop_footer_branch
      %15 = sbr.rel target = $region3
    $region8: #{tpu_custom_call.1} parent=1 // loop_exit
      _
    %678 = vsyncpa [#allocation3], 1
    %s679 = scalar_lea.sflag [#allocation3], 1
    %680 = vsyncpa %s679, 1

</llo_original>
